<compile_context>
chip_gen: v5e
topology: v5e:2x2
jax: 0.10.0
libtpu: 0.0.40
codegen_flags: <defaults>
</compile_context>

<pallas_src>
import jax
import jax.numpy as jnp
from jax.experimental import pallas as pl
from jax.experimental.pallas import tpu as pltpu


HIDDEN = 32      # hidden width of the synthetic hydro_model MLP
K_PAD = 8        # padded input-feature rows: x, y, t, 1 (bias), 4 zero rows
MAX_TM = 8192    # max collocation points per grid step (lane axis)


def _round_up(x, m):
    return ((x + m - 1) // m) * m


def _choose_tile(n):
    """Pick lane-tile TM and padded point count for N collocation points."""
    tm_full = _round_up(n, 128)
    if tm_full <= 1024:
        tm = tm_full                                    # single step (demo sizes)
    else:
        # Aim for >= 2 grid steps so both v7x TensorCores get work, cap at MAX_TM.
        tm = min(MAX_TM, _round_up((n + 1) // 2, 128))
    n_pad = _round_up(n, tm)
    return tm, n_pad


def build_xs_rows(x_ch, y_ch, t_ch, n_pad):
    """Build the (K_PAD, n_pad) lane-dense input slab: rows x, y, t, 1, 0..."""
    n = x_ch.shape[0]
    pad = n_pad - n

    def row(c):
        c = c.astype(jnp.float32).reshape(1, n)
        return jnp.pad(c, ((0, 0), (0, pad))) if pad else c

    ones = jnp.ones((1, n_pad), jnp.float32)
    zeros = jnp.zeros((K_PAD - 4, n_pad), jnp.float32)
    return jnp.concatenate([row(x_ch), row(y_ch), row(t_ch), ones, zeros], axis=0)


def _mlp_kernel(x_ref, w1p_ref, w2t_ref, b2_ref, w3t_ref, b3_ref, o_ref):
    # x_ref:   (K_PAD, TM)   rows: x, y, t, 1, 0, 0, 0, 0   (points on lanes)
    # w1p_ref: (H, K_PAD)    cols 0..2 = w1.T, col 3 = b1, rest zero
    # w2t_ref: (H, H)        == w2.T
    # b2_ref:  (H, 1)
    # w3t_ref: (3, H)        == w3.T
    # b3_ref:  (3, 1)
    # o_ref:   (3, TM)       rows: u, v, nse  (lane-dense, single DMA)

    # Layer 1 (MXU): bias folded in via the ones-row of x.
    h = jnp.tanh(
        jnp.dot(w1p_ref[...], x_ref[...], preferred_element_type=jnp.float32)
    )                                                               # (H, TM)

    # Layer 2 (MXU).
    h = jnp.tanh(
        jnp.dot(w2t_ref[...], h, preferred_element_type=jnp.float32)
        + b2_ref[...]
    )                                                               # (H, TM)

    # Layer 3 (MXU): one (3, H) x (H, TM) dot, stored as a single slab.
    o_ref[...] = (
        jnp.dot(w3t_ref[...], h, preferred_element_type=jnp.float32)
        + b3_ref[...]
    )                                                               # (3, TM)


def hydro_model_pallas(xs_rows, n, params):
    """Synthetic hydro_model MLP.

    xs_rows: (K_PAD, n_pad) lane-dense input slab (from build_xs_rows).
    n:       true number of collocation points.
    Returns (u [n], v [n], nse [n]).
    """
    w1, b1, w2, b2, w3, b3 = params
    n_pad = xs_rows.shape[1]
    tm, n_pad_expected = _choose_tile(n)
    assert n_pad == n_pad_expected, (n_pad, n_pad_expected)
    grid = (n_pad // tm,)

    # Weight prep for the (features, points) compute layout.
    w1p = jnp.concatenate(
        [w1.T.astype(jnp.float32),                       # (H, 3)
         jnp.reshape(b1, (HIDDEN, 1)).astype(jnp.float32),
         jnp.zeros((HIDDEN, K_PAD - 4), jnp.float32)],
        axis=1)                                          # (H, 8)
    w2t = w2.T.astype(jnp.float32)                       # (H, H)
    b2c = jnp.reshape(b2, (HIDDEN, 1)).astype(jnp.float32)
    w3t = w3.T.astype(jnp.float32)                       # (3, H)
    b3c = jnp.reshape(b3, (3, 1)).astype(jnp.float32)

    n_weight_elems = (HIDDEN * K_PAD + HIDDEN * HIDDEN + HIDDEN
                      + 3 * HIDDEN + 3)
    cost = pl.CostEstimate(
        flops=2 * (HIDDEN * K_PAD + HIDDEN * HIDDEN + 3 * HIDDEN) * n_pad,
        transcendentals=2 * HIDDEN * n_pad,
        bytes_accessed=4 * (K_PAD * n_pad + 3 * n_pad + n_weight_elems),
    )

    out = pl.pallas_call(
        _mlp_kernel,
        out_shape=jax.ShapeDtypeStruct((3, n_pad), jnp.float32),
        grid=grid,
        in_specs=[
            pl.BlockSpec((K_PAD, tm), lambda i: (0, i)),          # xs slab tile
            pl.BlockSpec((HIDDEN, K_PAD), lambda i: (0, 0)),      # w1 padded
            pl.BlockSpec((HIDDEN, HIDDEN), lambda i: (0, 0)),     # w2.T
            pl.BlockSpec((HIDDEN, 1), lambda i: (0, 0)),          # b2
            pl.BlockSpec((3, HIDDEN), lambda i: (0, 0)),          # w3.T
            pl.BlockSpec((3, 1), lambda i: (0, 0)),               # b3
        ],
        out_specs=pl.BlockSpec((3, tm), lambda i: (0, i)),        # (u, v, nse)
        compiler_params=pltpu.CompilerParams(
            dimension_semantics=("parallel",),
        ),
        cost_estimate=cost,
    )(xs_rows, w1p, w2t, b2c, w3t, b3c)

    u = out[0, :n]
    v = out[1, :n]
    nse = out[2, :n]
    return u, v, nse


def weak_pinn_forward(xs, true_data, grids, epoch, epochs, params, nu,
                      xs_rows=None):
    """Mirrors WeakPINN.forward: returns (NSE, u, v)."""
    x_grid, y_grid, t_grid = grids
    u_real, v_real = true_data  # unpacked but unused in the returned values

    n = xs.shape[0]
    if xs_rows is None:
        # Fallback path: build the lane-dense slab from (N, 3) xs.
        _, n_pad = _choose_tile(n)
        xs_rows = build_xs_rows(xs[:, 0], xs[:, 1], xs[:, 2], n_pad)

    u_flat, v_flat, nse = hydro_model_pallas(xs_rows, n, params)

    ns = (x_grid.shape[0], y_grid.shape[0], t_grid.shape[0])
    # Reshape f (N, 2) -> (nx, ny, nt, 2) and take channel 0/1 == reshape each
    # flat channel to (nx, ny, nt) directly (row-major point ordering).
    u = jnp.reshape(u_flat, ns)
    v = jnp.reshape(v_flat, ns)

    # TODO(synk): the `epoch == epochs - 1` branch does matplotlib quiver
    # plotting and file I/O; it has no kernel equivalent and is omitted.
    del epoch, epochs, u_real, v_real, nu
    return nse, u, v


def init_params(key):
    k1, k2, k3 = jax.random.split(key, 3)
    w1 = jax.random.normal(k1, (3, HIDDEN), jnp.float32) * 0.3
    b1 = jnp.zeros((1, HIDDEN), jnp.float32)
    w2 = jax.random.normal(k2, (HIDDEN, HIDDEN), jnp.float32) * 0.1
    b2 = jnp.zeros((1, HIDDEN), jnp.float32)
    w3 = jax.random.normal(k3, (HIDDEN, 3), jnp.float32) * 0.1
    b3 = jnp.zeros((1, 3), jnp.float32)
    return (w1, b1, w2, b2, w3, b3)


if __name__ == "__main__":
    key = jax.random.PRNGKey(0)
    kp, ku, kv = jax.random.split(key, 3)

    nx, ny, nt = 8, 8, 8                        # N = 512 collocation points
    x_grid = jnp.linspace(0.0, 1.0, nx)
    y_grid = jnp.linspace(0.0, 1.0, ny)
    t_grid = jnp.linspace(0.0, 1.0, nt)
    X, Y, T = jnp.meshgrid(x_grid, y_grid, t_grid, indexing="ij")

    x_ch = X.ravel().astype(jnp.float32)
    y_ch = Y.ravel().astype(jnp.float32)
    t_ch = T.ravel().astype(jnp.float32)
    xs = jnp.stack([x_ch, y_ch, t_ch], axis=-1)          # (N, 3) (reference only)

    n = xs.shape[0]
    _, n_pad = _choose_tile(n)
    # Build the lane-dense (8, N_pad) input slab directly from the meshgrid
    # channels (avoids a separate transpose+pad copy in the wrapper).
    xs_rows = build_xs_rows(x_ch, y_ch, t_ch, n_pad)

    u_real = jax.random.normal(ku, (nx, ny, nt), jnp.float32)
    v_real = jax.random.normal(kv, (nx, ny, nt), jnp.float32)
    true_data = (u_real, v_real)

    params = init_params(kp)
    nu = 0.01
    epoch, epochs = 0, 10

    nse, u, v = weak_pinn_forward(
        xs, true_data, (x_grid, y_grid, t_grid), epoch, epochs, params, nu,
        xs_rows=xs_rows,
    )
    jax.block_until_ready((nse, u, v))

    assert nse.shape == (nx * ny * nt,)
    assert u.shape == (nx, ny, nt)
    assert v.shape == (nx, ny, nt)

    # Cross-check against a plain-JAX reference of the same MLP.
    w1, b1, w2, b2, w3, b3 = params
    h_ref = jnp.tanh(xs @ w1 + b1)
    h_ref = jnp.tanh(h_ref @ w2 + b2)
    out_ref = h_ref @ w3 + b3
    u_ref_ = out_ref[:, 0].reshape(nx, ny, nt)
    v_ref_ = out_ref[:, 1].reshape(nx, ny, nt)
    nse_ref_ = out_ref[:, 2]
    assert jnp.allclose(u, u_ref_, atol=1e-5)
    assert jnp.allclose(v, v_ref_, atol=1e-5)
    assert jnp.allclose(nse, nse_ref_, atol=1e-5)

    print("KERNEL_OK")
</pallas_src>

<mosaic_0001>
module attributes {stable_mosaic.version = 11 : i64} {
  func.func @_mlp_kernel(%arg0: i32, %arg1: memref<8x512xf32, #tpu.memory_space<vmem>>, %arg2: memref<32x8xf32, #tpu.memory_space<vmem>>, %arg3: memref<32x32xf32, #tpu.memory_space<vmem>>, %arg4: memref<32x1xf32, #tpu.memory_space<vmem>>, %arg5: memref<3x32xf32, #tpu.memory_space<vmem>>, %arg6: memref<3x1xf32, #tpu.memory_space<vmem>>, %arg7: memref<3x512xf32, #tpu.memory_space<vmem>>) attributes {dimension_semantics = [#tpu.dimension_semantics<parallel>], iteration_bounds = array<i64: 1>, scalar_prefetch = 0 : i64, scratch_operands = 0 : i64, tpu.core_type = #tpu.core_type<tc>, window_params = [{transform_indices = @transform_0, window_bounds = array<i64: 8, 512>}, {pipeline_mode = #tpu.pipeline_mode<synchronous>, transform_indices = @transform_1, window_bounds = array<i64: 32, 8>}, {pipeline_mode = #tpu.pipeline_mode<synchronous>, transform_indices = @transform_2, window_bounds = array<i64: 32, 32>}, {pipeline_mode = #tpu.pipeline_mode<synchronous>, transform_indices = @transform_3, window_bounds = array<i64: 32, 1>}, {pipeline_mode = #tpu.pipeline_mode<synchronous>, transform_indices = @transform_4, window_bounds = array<i64: 3, 32>}, {pipeline_mode = #tpu.pipeline_mode<synchronous>, transform_indices = @transform_5, window_bounds = array<i64: 3, 1>}, {transform_indices = @transform_6, window_bounds = array<i64: 3, 512>}]} {
    %c0 = arith.constant 0 : index
    %c0_0 = arith.constant 0 : index
    %0 = vector.load %arg2[%c0, %c0_0] : memref<32x8xf32, #tpu.memory_space<vmem>>, vector<32x8xf32>
    %c0_1 = arith.constant 0 : index
    %c0_2 = arith.constant 0 : index
    %1 = vector.load %arg1[%c0_1, %c0_2] : memref<8x512xf32, #tpu.memory_space<vmem>>, vector<8x512xf32>
    %cst = arith.constant dense<0.000000e+00> : vector<32x512xf32>
    %2 = tpu.matmul %0, %1, %cst {dimension_numbers = #tpu.dot_dimension_numbers<[1], [0], [0], [1], [0, 0, 1, 1], [], []>} : vector<32x8xf32>, vector<8x512xf32>, vector<32x512xf32> -> vector<32x512xf32>
    %3 = math.tanh %2 : vector<32x512xf32>
    %c0_3 = arith.constant 0 : index
    %c0_4 = arith.constant 0 : index
    %4 = vector.load %arg3[%c0_3, %c0_4] : memref<32x32xf32, #tpu.memory_space<vmem>>, vector<32x32xf32>
    %cst_5 = arith.constant dense<0.000000e+00> : vector<32x512xf32>
    %5 = tpu.matmul %4, %3, %cst_5 {dimension_numbers = #tpu.dot_dimension_numbers<[1], [0], [0], [1], [0, 0, 1, 1], [], []>} : vector<32x32xf32>, vector<32x512xf32>, vector<32x512xf32> -> vector<32x512xf32>
    %c0_6 = arith.constant 0 : index
    %c0_7 = arith.constant 0 : index
    %6 = vector.load %arg4[%c0_6, %c0_7] : memref<32x1xf32, #tpu.memory_space<vmem>>, vector<32x1xf32>
    %7 = vector.broadcast %6 : vector<32x1xf32> to vector<32x512xf32>
    %8 = arith.addf %5, %7 : vector<32x512xf32>
    %9 = math.tanh %8 : vector<32x512xf32>
    %c0_8 = arith.constant 0 : index
    %c0_9 = arith.constant 0 : index
    %10 = vector.load %arg5[%c0_8, %c0_9] : memref<3x32xf32, #tpu.memory_space<vmem>>, vector<3x32xf32>
    %cst_10 = arith.constant dense<0.000000e+00> : vector<3x512xf32>
    %11 = tpu.matmul %10, %9, %cst_10 {dimension_numbers = #tpu.dot_dimension_numbers<[1], [0], [0], [1], [0, 0, 1, 1], [], []>} : vector<3x32xf32>, vector<32x512xf32>, vector<3x512xf32> -> vector<3x512xf32>
    %c0_11 = arith.constant 0 : index
    %c0_12 = arith.constant 0 : index
    %12 = vector.load %arg6[%c0_11, %c0_12] : memref<3x1xf32, #tpu.memory_space<vmem>>, vector<3x1xf32>
    %13 = vector.broadcast %12 : vector<3x1xf32> to vector<3x512xf32>
    %14 = arith.addf %11, %13 : vector<3x512xf32>
    %c0_13 = arith.constant 0 : index
    %c0_14 = arith.constant 0 : index
    %15 = vector.load %arg7[%c0_13, %c0_14] : memref<3x512xf32, #tpu.memory_space<vmem>>, vector<3x512xf32>
    tpu.vector_store %arg7[%c0_13, %c0_14], %14 {strides = array<i32>} : memref<3x512xf32, #tpu.memory_space<vmem>>, vector<3x512xf32>,
    return
  }
  func.func @transform_0(%arg0: i32) -> (i32, i32) {
    %c0_i32 = arith.constant 0 : i32
    %c0_i32_0 = arith.constant 0 : i32
    return %c0_i32, %arg0 : i32, i32
  }
  func.func @transform_1(%arg0: i32) -> (i32, i32) {
    %c0_i32 = arith.constant 0 : i32
    %c0_i32_0 = arith.constant 0 : i32
    %c0_i32_1 = arith.constant 0 : i32
    return %c0_i32, %c0_i32_0 : i32, i32
  }
  func.func @transform_2(%arg0: i32) -> (i32, i32) {
    %c0_i32 = arith.constant 0 : i32
    %c0_i32_0 = arith.constant 0 : i32
    %c0_i32_1 = arith.constant 0 : i32
    return %c0_i32, %c0_i32_0 : i32, i32
  }
  func.func @transform_3(%arg0: i32) -> (i32, i32) {
    %c0_i32 = arith.constant 0 : i32
    %c0_i32_0 = arith.constant 0 : i32
    %c0_i32_1 = arith.constant 0 : i32
    return %c0_i32, %c0_i32_0 : i32, i32
  }
  func.func @transform_4(%arg0: i32) -> (i32, i32) {
    %c0_i32 = arith.constant 0 : i32
    %c0_i32_0 = arith.constant 0 : i32
    %c0_i32_1 = arith.constant 0 : i32
    return %c0_i32, %c0_i32_0 : i32, i32
  }
  func.func @transform_5(%arg0: i32) -> (i32, i32) {
    %c0_i32 = arith.constant 0 : i32
    %c0_i32_0 = arith.constant 0 : i32
    %c0_i32_1 = arith.constant 0 : i32
    return %c0_i32, %c0_i32_0 : i32, i32
  }
  func.func @transform_6(%arg0: i32) -> (i32, i32) {
    %c0_i32 = arith.constant 0 : i32
    %c0_i32_0 = arith.constant 0 : i32
    return %c0_i32, %arg0 : i32, i32
  }
}

</mosaic_0001>

<llo_original>
// kernel: tpu_custom_call.1
$region0: #{tpu_custom_call.1}
  #allocation0 [shape = 'u32[]', space=smem, size = 0x4, offset = 0x4, fixed_abs, tag = 'smem constant byte address 0x4 - core index']
  #allocation1 [shape = 'u32[72,128]{1,0:T(1,128)}', space=vmem, size = 0x9000, scoped, tag = 'internal scratch']
  %s0 = inlined_call_operand.vmem [shape: f32[8,512], index: 0, kind: input, shape index: {}]
  %s1 = inlined_call_operand.vmem [shape: f32[32,8], index: 1, kind: input, shape index: {}]
  %s2 = inlined_call_operand.vmem [shape: f32[32,32], index: 2, kind: input, shape index: {}]
  %s3 = inlined_call_operand.vmem [shape: f32[32,1], index: 3, kind: input, shape index: {}]
  %s4 = inlined_call_operand.vmem [shape: f32[3,32], index: 4, kind: input, shape index: {}]
  %s5 = inlined_call_operand.vmem [shape: f32[3,1], index: 5, kind: input, shape index: {}]
  %s6 = inlined_call_operand.hbm [shape: f32[3,512], index: 6, kind: output, shape index: {}]
  %s7 = sld [smem:[#allocation0]]
  $region34: #{tpu_custom_call.1} parent=0
    _
  %s9 = ssub.s32 1, %s7
  %s10 = scalar_select 0, %s9, %s7
  $region1: #{tpu_custom_call.1} parent=0
    #allocation2 [shape = 'u8[8192]{0}', space=vmem, size = 0x2000, scoped, tag = 'output window, operand 0, single buffered']
    #allocation3 [shape = 's32[1]{0}', space=sflag, size = 0x4, scoped, tag = 'scoped memory for tpu_custom_call.1']
    %11 = vsyncpa [#allocation3], 0
    // Predicated region
    $region2: #{tpu_custom_call.1} parent=1 // pred_check
      _
    $region3: #{tpu_custom_call.1} parent=1 // pred_check_branch
      %13 = sbr.rel (0) target = $region5
    $region4: #{tpu_custom_call.1} parent=1 // pred_region
      _
    $region5: #{tpu_custom_call.1} parent=1 // pred_fallthru
      _
    // Predicated region
    $region6: #{tpu_custom_call.1} parent=1 // pred_check
      _
    $region7: #{tpu_custom_call.1} parent=1 // pred_check_branch
      %15 = sbr.rel (0) target = $region9
    $region8: #{tpu_custom_call.1} parent=1 // pred_region
      _
    $region9: #{tpu_custom_call.1} parent=1 // pred_fallthru
      _
    // Predicated region
    $region10: #{tpu_custom_call.1} parent=1 // pred_check
      _
    $region11: #{tpu_custom_call.1} parent=1 // pred_check_branch
      %17 = sbr.rel (0) target = $region13
    $region12: #{tpu_custom_call.1} parent=1 // pred_region
      _
    $region13: #{tpu_custom_call.1} parent=1 // pred_fallthru
      _
    // Predicated region
    $region14: #{tpu_custom_call.1} parent=1 // pred_check
      _
    $region15: #{tpu_custom_call.1} parent=1 // pred_check_branch
      %19 = sbr.rel (0) target = $region17
    $region16: #{tpu_custom_call.1} parent=1 // pred_region
      _
    $region17: #{tpu_custom_call.1} parent=1 // pred_fallthru
      _
    // Predicated region
    $region18: #{tpu_custom_call.1} parent=1 // pred_check
      _
    $region19: #{tpu_custom_call.1} parent=1 // pred_check_branch
      %21 = sbr.rel (0) target = $region21
    $region20: #{tpu_custom_call.1} parent=1 // pred_region
      _
    $region21: #{tpu_custom_call.1} parent=1 // pred_fallthru
      _
    // Predicated region
    $region22: #{tpu_custom_call.1} parent=1 // pred_check
      _
    $region23: #{tpu_custom_call.1} parent=1 // pred_check_branch
      %23 = sbr.rel (0) target = $region25
    $region24: #{tpu_custom_call.1} parent=1 // pred_region
      _
    $region25: #{tpu_custom_call.1} parent=1 // pred_fallthru
      _
    %v24 = vld [vmem:[%s1] sm:$0xff]
    %v25 = vld [vmem:[%s1 + $0x8] sm:$0xff]
    %v26 = vld [vmem:[%s1 + $0x10] sm:$0xff]
    %v27 = vld [vmem:[%s1 + $0x18] sm:$0xff]
    %v28 = vld [vmem:[%s0] sm:$0xff]
    %v29 = vld [vmem:[%s0 + $0x8] sm:$0xff]
    %v30 = vld [vmem:[%s0 + $0x10] sm:$0xff]
    %v31 = vld [vmem:[%s0 + $0x18] sm:$0xff]
    %vm32 = vcmask 64512
    %v34 = vsel %vm32, %v24, 0
    %v37 = vsel %vm32, %v25, 0
    %v40 = vsel %vm32, %v26, 0
    %v43 = vsel %vm32, %v27, 0
    %45 = vmatpush.msra.mxu0 0.0
    %46 = vmatpush.msra.mxu0 0.0
    %47 = vmatpush.msra.mxu0 0.0
    %48 = vmatpush.msra.mxu0 0.0
    %49 = vmatpush.msra.mxu0 0.0
    %50 = vmatpush.msra.mxu0 0.0
    %51 = vmatpush.msra.mxu0 0.0
    %52 = vmatpush.msra.mxu0 0.0
    %53 = vmatpush.msra.mxu0 0.0
    %54 = vmatpush.msra.mxu0 0.0
    %55 = vmatpush.msra.mxu0 0.0
    %56 = vmatpush.msra.mxu0 0.0
    %57 = vmatpush.msra.mxu0 0.0
    %58 = vmatpush.msra.mxu0 0.0
    %59 = vmatpush.msra.mxu0 0.0
    %60 = vmatpush.msra.mxu0 %v28
    %61 = vmatmul.f32.gmra.mxu0 %v34
    %v62 = vpop.f32.mrf.mxu0
    %v63 = vadd.f32 0.0, %v62
    %64 = vmatmul.f32.gmra.mxu0 %v37
    %v65 = vpop.f32.mrf.mxu0
    %v66 = vadd.f32 0.0, %v65
    %67 = vmatmul.f32.gmra.mxu0 %v40
    %v68 = vpop.f32.mrf.mxu0
    %v69 = vadd.f32 0.0, %v68
    %70 = vmatmul.f32.gmra.mxu0 %v43
    %v71 = vpop.f32.mrf.mxu0
    %v72 = vadd.f32 0.0, %v71
    %73 = vdwg.mxu0
    %74 = vmatpush.msra.mxu0 0.0
    %75 = vmatpush.msra.mxu0 0.0
    %76 = vmatpush.msra.mxu0 0.0
    %77 = vmatpush.msra.mxu0 0.0
    %78 = vmatpush.msra.mxu0 0.0
    %79 = vmatpush.msra.mxu0 0.0
    %80 = vmatpush.msra.mxu0 0.0
    %81 = vmatpush.msra.mxu0 0.0
    %82 = vmatpush.msra.mxu0 0.0
    %83 = vmatpush.msra.mxu0 0.0
    %84 = vmatpush.msra.mxu0 0.0
    %85 = vmatpush.msra.mxu0 0.0
    %86 = vmatpush.msra.mxu0 0.0
    %87 = vmatpush.msra.mxu0 0.0
    %88 = vmatpush.msra.mxu0 0.0
    %89 = vmatpush.msra.mxu0 %v29
    %90 = vmatmul.f32.gmra.mxu0 %v34
    %v91 = vpop.f32.mrf.mxu0
    %v92 = vadd.f32 0.0, %v91
    %93 = vmatmul.f32.gmra.mxu0 %v37
    %v94 = vpop.f32.mrf.mxu0
    %v95 = vadd.f32 0.0, %v94
    %96 = vmatmul.f32.gmra.mxu0 %v40
    %v97 = vpop.f32.mrf.mxu0
    %v98 = vadd.f32 0.0, %v97
    %99 = vmatmul.f32.gmra.mxu0 %v43
    %v100 = vpop.f32.mrf.mxu0
    %v101 = vadd.f32 0.0, %v100
    %102 = vdwg.mxu0
    %103 = vmatpush.msra.mxu0 0.0
    %104 = vmatpush.msra.mxu0 0.0
    %105 = vmatpush.msra.mxu0 0.0
    %106 = vmatpush.msra.mxu0 0.0
    %107 = vmatpush.msra.mxu0 0.0
    %108 = vmatpush.msra.mxu0 0.0
    %109 = vmatpush.msra.mxu0 0.0
    %110 = vmatpush.msra.mxu0 0.0
    %111 = vmatpush.msra.mxu0 0.0
    %112 = vmatpush.msra.mxu0 0.0
    %113 = vmatpush.msra.mxu0 0.0
    %114 = vmatpush.msra.mxu0 0.0
    %115 = vmatpush.msra.mxu0 0.0
    %116 = vmatpush.msra.mxu0 0.0
    %117 = vmatpush.msra.mxu0 0.0
    %118 = vmatpush.msra.mxu0 %v30
    %119 = vmatmul.f32.gmra.mxu0 %v34
    %v120 = vpop.f32.mrf.mxu0
    %v121 = vadd.f32 0.0, %v120
    %122 = vmatmul.f32.gmra.mxu0 %v37
    %v123 = vpop.f32.mrf.mxu0
    %v124 = vadd.f32 0.0, %v123
    %125 = vmatmul.f32.gmra.mxu0 %v40
    %v126 = vpop.f32.mrf.mxu0
    %v127 = vadd.f32 0.0, %v126
    %128 = vmatmul.f32.gmra.mxu0 %v43
    %v129 = vpop.f32.mrf.mxu0
    %v130 = vadd.f32 0.0, %v129
    %131 = vdwg.mxu0
    %132 = vmatpush.msra.mxu0 0.0
    %133 = vmatpush.msra.mxu0 0.0
    %134 = vmatpush.msra.mxu0 0.0
    %135 = vmatpush.msra.mxu0 0.0
    %136 = vmatpush.msra.mxu0 0.0
    %137 = vmatpush.msra.mxu0 0.0
    %138 = vmatpush.msra.mxu0 0.0
    %139 = vmatpush.msra.mxu0 0.0
    %140 = vmatpush.msra.mxu0 0.0
    %141 = vmatpush.msra.mxu0 0.0
    %142 = vmatpush.msra.mxu0 0.0
    %143 = vmatpush.msra.mxu0 0.0
    %144 = vmatpush.msra.mxu0 0.0
    %145 = vmatpush.msra.mxu0 0.0
    %146 = vmatpush.msra.mxu0 0.0
    %147 = vmatpush.msra.mxu0 %v31
    %148 = vmatmul.f32.gmra.mxu0 %v34
    %v149 = vpop.f32.mrf.mxu0
    %v150 = vadd.f32 0.0, %v149
    %151 = vmatmul.f32.gmra.mxu0 %v37
    %v152 = vpop.f32.mrf.mxu0
    %v153 = vadd.f32 0.0, %v152
    %154 = vmatmul.f32.gmra.mxu0 %v40
    %v155 = vpop.f32.mrf.mxu0
    %v156 = vadd.f32 0.0, %v155
    %157 = vmatmul.f32.gmra.mxu0 %v43
    %v158 = vpop.f32.mrf.mxu0
    %v159 = vadd.f32 0.0, %v158
    %160 = vdwg.mxu0
    %v161 = vtanh.pop %v63
    %v162 = vtanh.pop %v92
    %v163 = vtanh.pop %v121
    %v164 = vtanh.pop %v150
    %v165 = vtanh.pop %v66
    %v166 = vtanh.pop %v95
    %v167 = vtanh.pop %v124
    %v168 = vtanh.pop %v153
    %v169 = vtanh.pop %v69
    %v170 = vtanh.pop %v98
    %v171 = vtanh.pop %v127
    %v172 = vtanh.pop %v156
    %v173 = vtanh.pop %v72
    %v174 = vtanh.pop %v101
    %v175 = vtanh.pop %v130
    %v176 = vtanh.pop %v159
    %v177 = vld [vmem:[%s2] sm:$0xff]
    %v178 = vld [vmem:[%s2 + $0x8] sm:$0xff]
    %v179 = vld [vmem:[%s2 + $0x10] sm:$0xff]
    %v180 = vld [vmem:[%s2 + $0x18] sm:$0xff]
    %v181 = vld [vmem:[%s3] sm:$0xff]
    %v182 = vld [vmem:[%s3 + $0x8] sm:$0xff]
    %v183 = vld [vmem:[%s3 + $0x10] sm:$0xff]
    %v184 = vld [vmem:[%s3 + $0x18] sm:$0xff]
    %186 = vset.pattern.permute.xlu0 0
    %187 = vperm.xlu0 %186, %v181
    %v188 = vpop.permute.xlu0 %187
    %191 = vset.pattern.permute.xlu0 0
    %192 = vperm.xlu0 %191, %v182
    %v193 = vpop.permute.xlu0 %192
    %196 = vset.pattern.permute.xlu0 0
    %197 = vperm.xlu0 %196, %v183
    %v198 = vpop.permute.xlu0 %197
    %201 = vset.pattern.permute.xlu0 0
    %202 = vperm.xlu0 %201, %v184
    %v203 = vpop.permute.xlu0 %202
    %vm205 = vcmask 261120
    %v207 = vsel %vm205, %v177, 0
    %v210 = vsel %vm205, %v178, 0
    %v213 = vsel %vm205, %v179, 0
    %v216 = vsel %vm205, %v180, 0
    %218 = vmatpush.msra.mxu0 0.0
    %219 = vmatpush.msra.mxu0 0.0
    %220 = vmatpush.msra.mxu0 0.0
    %221 = vmatpush.msra.mxu0 0.0
    %222 = vmatpush.msra.mxu0 0.0
    %223 = vmatpush.msra.mxu0 0.0
    %224 = vmatpush.msra.mxu0 0.0
    %225 = vmatpush.msra.mxu0 0.0
    %226 = vmatpush.msra.mxu0 0.0
    %227 = vmatpush.msra.mxu0 0.0
    %228 = vmatpush.msra.mxu0 0.0
    %229 = vmatpush.msra.mxu0 0.0
    %230 = vmatpush.msra.mxu0 %v173
    %231 = vmatpush.msra.mxu0 %v169
    %232 = vmatpush.msra.mxu0 %v165
    %233 = vmatpush.msra.mxu0 %v161
    %234 = vmatmul.f32.gmra.mxu0 %v207
    %v235 = vpop.f32.mrf.mxu0
    %v236 = vadd.f32 %v188, %v235
    %237 = vmatmul.f32.gmra.mxu0 %v210
    %v238 = vpop.f32.mrf.mxu0
    %v239 = vadd.f32 %v193, %v238
    %240 = vmatmul.f32.gmra.mxu0 %v213
    %v241 = vpop.f32.mrf.mxu0
    %v242 = vadd.f32 %v198, %v241
    %243 = vmatmul.f32.gmra.mxu0 %v216
    %v244 = vpop.f32.mrf.mxu0
    %v245 = vadd.f32 %v203, %v244
    %246 = vdwg.mxu0
    %247 = vmatpush.msra.mxu0 0.0
    %248 = vmatpush.msra.mxu0 0.0
    %249 = vmatpush.msra.mxu0 0.0
    %250 = vmatpush.msra.mxu0 0.0
    %251 = vmatpush.msra.mxu0 0.0
    %252 = vmatpush.msra.mxu0 0.0
    %253 = vmatpush.msra.mxu0 0.0
    %254 = vmatpush.msra.mxu0 0.0
    %255 = vmatpush.msra.mxu0 0.0
    %256 = vmatpush.msra.mxu0 0.0
    %257 = vmatpush.msra.mxu0 0.0
    %258 = vmatpush.msra.mxu0 0.0
    %259 = vmatpush.msra.mxu0 %v174
    %260 = vmatpush.msra.mxu0 %v170
    %261 = vmatpush.msra.mxu0 %v166
    %262 = vmatpush.msra.mxu0 %v162
    %263 = vmatmul.f32.gmra.mxu0 %v207
    %v264 = vpop.f32.mrf.mxu0
    %v265 = vadd.f32 %v188, %v264
    %266 = vmatmul.f32.gmra.mxu0 %v210
    %v267 = vpop.f32.mrf.mxu0
    %v268 = vadd.f32 %v193, %v267
    %269 = vmatmul.f32.gmra.mxu0 %v213
    %v270 = vpop.f32.mrf.mxu0
    %v271 = vadd.f32 %v198, %v270
    %272 = vmatmul.f32.gmra.mxu0 %v216
    %v273 = vpop.f32.mrf.mxu0
    %v274 = vadd.f32 %v203, %v273
    %275 = vdwg.mxu0
    %276 = vmatpush.msra.mxu0 0.0
    %277 = vmatpush.msra.mxu0 0.0
    %278 = vmatpush.msra.mxu0 0.0
    %279 = vmatpush.msra.mxu0 0.0
    %280 = vmatpush.msra.mxu0 0.0
    %281 = vmatpush.msra.mxu0 0.0
    %282 = vmatpush.msra.mxu0 0.0
    %283 = vmatpush.msra.mxu0 0.0
    %284 = vmatpush.msra.mxu0 0.0
    %285 = vmatpush.msra.mxu0 0.0
    %286 = vmatpush.msra.mxu0 0.0
    %287 = vmatpush.msra.mxu0 0.0
    %288 = vmatpush.msra.mxu0 %v175
    %289 = vmatpush.msra.mxu0 %v171
    %290 = vmatpush.msra.mxu0 %v167
    %291 = vmatpush.msra.mxu0 %v163
    %292 = vmatmul.f32.gmra.mxu0 %v207
    %v293 = vpop.f32.mrf.mxu0
    %v294 = vadd.f32 %v188, %v293
    %295 = vmatmul.f32.gmra.mxu0 %v210
    %v296 = vpop.f32.mrf.mxu0
    %v297 = vadd.f32 %v193, %v296
    %298 = vmatmul.f32.gmra.mxu0 %v213
    %v299 = vpop.f32.mrf.mxu0
    %v300 = vadd.f32 %v198, %v299
    %301 = vmatmul.f32.gmra.mxu0 %v216
    %v302 = vpop.f32.mrf.mxu0
    %v303 = vadd.f32 %v203, %v302
    %304 = vdwg.mxu0
    %305 = vmatpush.msra.mxu0 0.0
    %306 = vmatpush.msra.mxu0 0.0
    %307 = vmatpush.msra.mxu0 0.0
    %308 = vmatpush.msra.mxu0 0.0
    %309 = vmatpush.msra.mxu0 0.0
    %310 = vmatpush.msra.mxu0 0.0
    %311 = vmatpush.msra.mxu0 0.0
    %312 = vmatpush.msra.mxu0 0.0
    %313 = vmatpush.msra.mxu0 0.0
    %314 = vmatpush.msra.mxu0 0.0
    %315 = vmatpush.msra.mxu0 0.0
    %316 = vmatpush.msra.mxu0 0.0
    %317 = vmatpush.msra.mxu0 %v176
    %318 = vmatpush.msra.mxu0 %v172
    %319 = vmatpush.msra.mxu0 %v168
    %320 = vmatpush.msra.mxu0 %v164
    %321 = vmatmul.f32.gmra.mxu0 %v207
    %v322 = vpop.f32.mrf.mxu0
    %v323 = vadd.f32 %v188, %v322
    %324 = vmatmul.f32.gmra.mxu0 %v210
    %v325 = vpop.f32.mrf.mxu0
    %v326 = vadd.f32 %v193, %v325
    %327 = vmatmul.f32.gmra.mxu0 %v213
    %v328 = vpop.f32.mrf.mxu0
    %v329 = vadd.f32 %v198, %v328
    %330 = vmatmul.f32.gmra.mxu0 %v216
    %v331 = vpop.f32.mrf.mxu0
    %v332 = vadd.f32 %v203, %v331
    %333 = vdwg.mxu0
    %v334 = vtanh.pop %v236
    %v335 = vtanh.pop %v265
    %v336 = vtanh.pop %v294
    %v337 = vtanh.pop %v323
    %v338 = vtanh.pop %v239
    %v339 = vtanh.pop %v268
    %v340 = vtanh.pop %v297
    %v341 = vtanh.pop %v326
    %v342 = vtanh.pop %v242
    %v343 = vtanh.pop %v271
    %v344 = vtanh.pop %v300
    %v345 = vtanh.pop %v329
    %v346 = vtanh.pop %v245
    %v347 = vtanh.pop %v274
    %v348 = vtanh.pop %v303
    %v349 = vtanh.pop %v332
    %v350 = vld [vmem:[%s4] sm:$0x7]
    %v351 = vld [vmem:[%s5] sm:$0x7]
    %353 = vset.pattern.permute.xlu0 0
    %354 = vperm.xlu0 %353, %v351
    %v355 = vpop.permute.xlu0 %354
    %v358 = vsel %vm205, %v350, 0
    %360 = vmatpush.msra.mxu0 0.0
    %361 = vmatpush.msra.mxu0 0.0
    %362 = vmatpush.msra.mxu0 0.0
    %363 = vmatpush.msra.mxu0 0.0
    %364 = vmatpush.msra.mxu0 0.0
    %365 = vmatpush.msra.mxu0 0.0
    %366 = vmatpush.msra.mxu0 0.0
    %367 = vmatpush.msra.mxu0 0.0
    %368 = vmatpush.msra.mxu0 0.0
    %369 = vmatpush.msra.mxu0 0.0
    %370 = vmatpush.msra.mxu0 0.0
    %371 = vmatpush.msra.mxu0 0.0
    %372 = vmatpush.msra.mxu0 %v346
    %373 = vmatpush.msra.mxu0 %v342
    %374 = vmatpush.msra.mxu0 %v338
    %375 = vmatpush.msra.mxu0 %v334
    %376 = vmatmul.f32.gmra.mxu0 %v358
    %v377 = vpop.f32.mrf.mxu0
    %v378 = vadd.f32 %v355, %v377
    %379 = vdwg.mxu0
    %380 = vmatpush.msra.mxu0 0.0
    %381 = vmatpush.msra.mxu0 0.0
    %382 = vmatpush.msra.mxu0 0.0
    %383 = vmatpush.msra.mxu0 0.0
    %384 = vmatpush.msra.mxu0 0.0
    %385 = vmatpush.msra.mxu0 0.0
    %386 = vmatpush.msra.mxu0 0.0
    %387 = vmatpush.msra.mxu0 0.0
    %388 = vmatpush.msra.mxu0 0.0
    %389 = vmatpush.msra.mxu0 0.0
    %390 = vmatpush.msra.mxu0 0.0
    %391 = vmatpush.msra.mxu0 0.0
    %392 = vmatpush.msra.mxu0 %v347
    %393 = vmatpush.msra.mxu0 %v343
    %394 = vmatpush.msra.mxu0 %v339
    %395 = vmatpush.msra.mxu0 %v335
    %396 = vmatmul.f32.gmra.mxu0 %v358
    %v397 = vpop.f32.mrf.mxu0
    %v398 = vadd.f32 %v355, %v397
    %399 = vdwg.mxu0
    %400 = vmatpush.msra.mxu0 0.0
    %401 = vmatpush.msra.mxu0 0.0
    %402 = vmatpush.msra.mxu0 0.0
    %403 = vmatpush.msra.mxu0 0.0
    %404 = vmatpush.msra.mxu0 0.0
    %405 = vmatpush.msra.mxu0 0.0
    %406 = vmatpush.msra.mxu0 0.0
    %407 = vmatpush.msra.mxu0 0.0
    %408 = vmatpush.msra.mxu0 0.0
    %409 = vmatpush.msra.mxu0 0.0
    %410 = vmatpush.msra.mxu0 0.0
    %411 = vmatpush.msra.mxu0 0.0
    %412 = vmatpush.msra.mxu0 %v348
    %413 = vmatpush.msra.mxu0 %v344
    %414 = vmatpush.msra.mxu0 %v340
    %415 = vmatpush.msra.mxu0 %v336
    %416 = vmatmul.f32.gmra.mxu0 %v358
    %v417 = vpop.f32.mrf.mxu0
    %v418 = vadd.f32 %v355, %v417
    %419 = vdwg.mxu0
    %420 = vmatpush.msra.mxu0 0.0
    %421 = vmatpush.msra.mxu0 0.0
    %422 = vmatpush.msra.mxu0 0.0
    %423 = vmatpush.msra.mxu0 0.0
    %424 = vmatpush.msra.mxu0 0.0
    %425 = vmatpush.msra.mxu0 0.0
    %426 = vmatpush.msra.mxu0 0.0
    %427 = vmatpush.msra.mxu0 0.0
    %428 = vmatpush.msra.mxu0 0.0
    %429 = vmatpush.msra.mxu0 0.0
    %430 = vmatpush.msra.mxu0 0.0
    %431 = vmatpush.msra.mxu0 0.0
    %432 = vmatpush.msra.mxu0 %v349
    %433 = vmatpush.msra.mxu0 %v345
    %434 = vmatpush.msra.mxu0 %v341
    %435 = vmatpush.msra.mxu0 %v337
    %436 = vmatmul.f32.gmra.mxu0 %v358
    %v437 = vpop.f32.mrf.mxu0
    %v438 = vadd.f32 %v355, %v437
    %439 = vdwg.mxu0
    %v444 = vrot.slane %v398, 4
    %v445 = vrot.slane %v438, 4
    %vm446 = vcmask 1043456
    %v447 = vsel %vm446, %v378, %v444
    %v448 = vsel %vm446, %v418, %v445
    %451 = vst [vmem:[#allocation2] sm:$0x77] %v447
    %452 = vst [vmem:[#allocation2 + $0x8] sm:$0x77] %v448
    // Predicated region
    $region26: #{tpu_custom_call.1} parent=1 // pred_check
      _
    $region27: #{tpu_custom_call.1} parent=1 // pred_check_branch
      %454 = sbr.rel (0) target = $region29
    $region28: #{tpu_custom_call.1} parent=1 // pred_region
      %456 = vsyncadd [#allocation3], 0
      %s458 = sshll.u32 [#allocation2], 4
      %s459 = int_to_ptr.vmem [resolvable:$true] %s458
      %s460 = sshll.u32 %s6, 4
      %s461 = int_to_ptr.hbm [resolvable:$true] %s460
      %463 = dma.vmem_to_hbm [thread:$0]  %s459, 256, %s461, [#allocation3]
    $region29: #{tpu_custom_call.1} parent=1 // pred_fallthru
      _
    // Predicated region
    $region30: #{tpu_custom_call.1} parent=1 // pred_check
      _
    $region31: #{tpu_custom_call.1} parent=1 // pred_check_branch
      %465 = sbr.rel (0) target = $region33
    $region32: #{tpu_custom_call.1} parent=1 // pred_region
      %467 = dma.done [#allocation3], 256
    $region33: #{tpu_custom_call.1} parent=1 // pred_fallthru
      _
    %468 = vsyncpa [#allocation3], 1

</llo_original>
